<compile_context>
chip_gen: v5e
topology: v5e:2x2
jax: 0.10.0
libtpu: 0.0.40
codegen_flags: <defaults>
</compile_context>

<pallas_src>
import functools

import jax
import jax.numpy as jnp
import numpy as np
from jax.experimental import pallas as pl
from jax.experimental.pallas import tpu as pltpu

EPS = 1e-5  # PyTorch BatchNorm1d default eps


def _shifted(h, off, c, l):
    """Columns of the result hold h[:, t + off]; out-of-range columns are zero."""
    if off == 0:
        return h
    if off > 0:
        return jnp.concatenate([h[:, off:], jnp.zeros((c, off), jnp.float32)], axis=1)
    return jnp.concatenate([jnp.zeros((c, -off), jnp.float32), h[:, : l + off]], axis=1)


def _bn_relu_dilated_conv(x, scale, shift, w_fold, bias, *, k, dil, pad, c, l):
    """Affine(BN) -> ReLU -> dilated 'same' conv, as a single (C, k*C) @ (k*C, L) matmul."""
    h = jnp.maximum(x * scale + shift, 0.0)                            # (C, L)
    # Fold the k dilated taps along the contraction dim (im2col): only the edge strips of
    # each tap are zero-filled; no full padded buffer is written.
    col = jnp.concatenate([_shifted(h, j * dil - pad, c, l) for j in range(k)], axis=0)
    y = jnp.dot(w_fold, col, preferred_element_type=jnp.float32)       # (C, L), lane-dense
    return y + bias                                                    # bias: (C, 1)


def _stats_kernel(x_ref, w1_ref, v1_ref, stats_ref, *, k, dil, pad):
    """Pass 1: per-sample partial sums of conv1(relu(bn1(x))) for BN2 batch statistics."""
    c, l = x_ref.shape[1], x_ref.shape[2]
    x = x_ref[0].astype(jnp.float32)                                   # (C, L)
    v = v1_ref[...]                                                    # (C, 3): scale1, shift1, b1
    y = _bn_relu_dilated_conv(x, v[:, 0:1], v[:, 1:2], w1_ref[...], v[:, 2:3],
                              k=k, dil=dil, pad=pad, c=c, l=l)
    s = jnp.sum(y, axis=1, keepdims=True)                              # (C, 1)
    ss = jnp.sum(y * y, axis=1, keepdims=True)                         # (C, 1)
    stats_ref[0] = jnp.concatenate([s, ss], axis=1)                    # (C, 2)


def _fused_kernel(x_ref, w1_ref, w2_ref, v_ref, o_ref, *, k, dil, pad):
    """Pass 2: recompute conv1, then BN2 -> ReLU -> conv2 -> +x (h1 never touches HBM)."""
    c, l = x_ref.shape[1], x_ref.shape[2]
    x = x_ref[0].astype(jnp.float32)                                   # (C, L)
    v = v_ref[...]                                                     # (C, 6)
    h1 = _bn_relu_dilated_conv(x, v[:, 0:1], v[:, 1:2], w1_ref[...], v[:, 2:3],
                               k=k, dil=dil, pad=pad, c=c, l=l)
    y = _bn_relu_dilated_conv(h1, v[:, 3:4], v[:, 4:5], w2_ref[...], v[:, 5:6],
                              k=k, dil=dil, pad=pad, c=c, l=l)
    o_ref[0] = (y + x).astype(o_ref.dtype)                             # residual add


def _fold_conv_weight(w):
    # PyTorch Conv1d weight (C_out, C_in, K) -> (C_out, K*C_in) so w_fold[co, j*C+ci] = w[co, ci, j]
    co, ci, kk = w.shape
    return jnp.transpose(w, (0, 2, 1)).reshape(co, kk * ci)


@functools.partial(jax.jit, static_argnames=("k", "dil"))
def residual_block(x, params, *, k, dil):
    """x: (N, C, L) float32 (PyTorch Conv1d layout). Returns (N, C, L)."""
    assert dil * (k - 1) % 2 == 0
    pad = dil * (k - 1) // 2
    n, c, l = x.shape
    assert pad < l

    # --- BN1 batch statistics (training-mode: biased variance over (N, L)) ----------------
    mean1 = jnp.mean(x, axis=(0, 2))
    var1 = jnp.var(x, axis=(0, 2))                      # ddof=0 (biased), matches PyTorch
    scale1 = params["g1"] / jnp.sqrt(var1 + EPS)
    shift1 = params["beta1"] - mean1 * scale1

    w1 = _fold_conv_weight(params["w1"])
    w2 = _fold_conv_weight(params["w2"])
    v1 = jnp.stack([scale1, shift1, params["b1"]], axis=1)             # (C, 3)

    act_spec = pl.BlockSpec((1, c, l), lambda i: (i, 0, 0))
    w_spec = pl.BlockSpec((c, k * c), lambda i: (0, 0))                # resident across steps
    v1_spec = pl.BlockSpec((c, 3), lambda i: (0, 0))
    v2_spec = pl.BlockSpec((c, 6), lambda i: (0, 0))
    stats_spec = pl.BlockSpec((1, c, 2), lambda i: (i, 0, 0))

    flops_conv = 2 * n * l * c * (k * c)
    bytes_act = n * c * l * 4
    bytes_w = 4 * (k * c * c + 3 * c)

    # --- pass 1: BN1 affine + ReLU + conv1, emit per-sample BN2 partial statistics --------
    stats = pl.pallas_call(
        functools.partial(_stats_kernel, k=k, dil=dil, pad=pad),
        grid=(n,),
        in_specs=[act_spec, w_spec, v1_spec],
        out_specs=stats_spec,
        out_shape=jax.ShapeDtypeStruct((n, c, 2), jnp.float32),
        compiler_params=pltpu.CompilerParams(dimension_semantics=("parallel",)),
        cost_estimate=pl.CostEstimate(flops=flops_conv, transcendentals=0,
                                      bytes_accessed=bytes_act + bytes_w + n * c * 2 * 4),
    )(x, w1, v1)

    # --- finish BN2 batch statistics from the per-sample partial sums ---------------------
    cnt = float(n * l)
    mean2 = jnp.sum(stats[:, :, 0], axis=0) / cnt
    var2 = jnp.maximum(jnp.sum(stats[:, :, 1], axis=0) / cnt - mean2 * mean2, 0.0)
    scale2 = params["g2"] / jnp.sqrt(var2 + EPS)
    shift2 = params["beta2"] - mean2 * scale2
    v2 = jnp.stack([scale1, shift1, params["b1"],
                    scale2, shift2, params["b2"]], axis=1)             # (C, 6)

    # --- pass 2: recompute conv1, then BN2 affine + ReLU + conv2 + residual add -----------
    out = pl.pallas_call(
        functools.partial(_fused_kernel, k=k, dil=dil, pad=pad),
        grid=(n,),
        in_specs=[act_spec, w_spec, w_spec, v2_spec],
        out_specs=act_spec,
        out_shape=jax.ShapeDtypeStruct((n, c, l), jnp.float32),
        compiler_params=pltpu.CompilerParams(dimension_semantics=("parallel",)),
        cost_estimate=pl.CostEstimate(flops=2 * flops_conv, transcendentals=0,
                                      bytes_accessed=2 * bytes_act + 2 * bytes_w),
    )(x, w1, w2, v2)
    return out


def reference_residual_block(x_ncl, params, *, k, dil):
    """Pure-JAX mirror of the PyTorch forward (training-mode BN) for checking."""
    pad = dil * (k - 1) // 2

    def bn_relu(h, g, b):  # h: (N, C, L)
        mean = h.mean(axis=(0, 2), keepdims=True)
        var = ((h - mean) ** 2).mean(axis=(0, 2), keepdims=True)
        h = (h - mean) / jnp.sqrt(var + EPS) * g[None, :, None] + b[None, :, None]
        return jax.nn.relu(h)

    def conv(h, w, b):
        y = jax.lax.conv_general_dilated(
            h, w, window_strides=(1,), padding=[(pad, pad)],
            rhs_dilation=(dil,), dimension_numbers=("NCH", "OIH", "NCH"))
        return y + b[None, :, None]

    h = conv(bn_relu(x_ncl, params["g1"], params["beta1"]), params["w1"], params["b1"])
    h = conv(bn_relu(h, params["g2"], params["beta2"]), params["w2"], params["b2"])
    return h + x_ncl


if __name__ == "__main__":
    # Small shapes consistent with Conv1d input (N, C, L); k=3, dil=2 -> padding=2.
    N, C, L, K, DIL = 2, 32, 16, 3, 2

    key = jax.random.PRNGKey(0)
    ks = jax.random.split(key, 9)
    params = {
        "w1": 0.1 * jax.random.normal(ks[0], (C, C, K), jnp.float32),
        "b1": 0.1 * jax.random.normal(ks[1], (C,), jnp.float32),
        "g1": 1.0 + 0.1 * jax.random.normal(ks[2], (C,), jnp.float32),
        "beta1": 0.1 * jax.random.normal(ks[3], (C,), jnp.float32),
        "w2": 0.1 * jax.random.normal(ks[4], (C, C, K), jnp.float32),
        "b2": 0.1 * jax.random.normal(ks[5], (C,), jnp.float32),
        "g2": 1.0 + 0.1 * jax.random.normal(ks[6], (C,), jnp.float32),
        "beta2": 0.1 * jax.random.normal(ks[7], (C,), jnp.float32),
    }
    x = jax.random.normal(ks[8], (N, C, L), jnp.float32)

    out = jax.block_until_ready(residual_block(x, params, k=K, dil=DIL))
    ref = jax.block_until_ready(reference_residual_block(x, params, k=K, dil=DIL))
    np.testing.assert_allclose(np.asarray(out), np.asarray(ref), rtol=1e-3, atol=1e-3)

    print("KERNEL_OK")
</pallas_src>

<mosaic_0001>
module attributes {stable_mosaic.version = 11 : i64} {
  func.func @_stats_kernel(%arg0: i32, %arg1: memref<1x32x16xf32, #tpu.memory_space<vmem>>, %arg2: memref<32x96xf32, #tpu.memory_space<vmem>>, %arg3: memref<32x3xf32, #tpu.memory_space<vmem>>, %arg4: memref<1x32x2xf32, #tpu.memory_space<vmem>>) attributes {dimension_semantics = [#tpu.dimension_semantics<parallel>], iteration_bounds = array<i64: 2>, scalar_prefetch = 0 : i64, scratch_operands = 0 : i64, tpu.core_type = #tpu.core_type<tc>, window_params = [{transform_indices = @transform_0, window_bounds = array<i64: 1, 32, 16>}, {pipeline_mode = #tpu.pipeline_mode<synchronous>, transform_indices = @transform_1, window_bounds = array<i64: 32, 96>}, {pipeline_mode = #tpu.pipeline_mode<synchronous>, transform_indices = @transform_2, window_bounds = array<i64: 32, 3>}, {transform_indices = @transform_3, window_bounds = array<i64: 1, 32, 2>}]} {
    %c0 = arith.constant 0 : index
    %c0_0 = arith.constant 0 : index
    %c0_1 = arith.constant 0 : index
    %0 = vector.load %arg1[%c0, %c0_0, %c0_1] : memref<1x32x16xf32, #tpu.memory_space<vmem>>, vector<1x32x16xf32>
    %1 = vector.shape_cast %0 : vector<1x32x16xf32> to vector<32x16xf32>
    %c0_2 = arith.constant 0 : index
    %c0_3 = arith.constant 0 : index
    %2 = vector.load %arg3[%c0_2, %c0_3] : memref<32x3xf32, #tpu.memory_space<vmem>>, vector<32x3xf32>
    %3 = vector.extract_strided_slice %2 {offsets = [0, 0], sizes = [32, 1], strides = [1, 1]} : vector<32x3xf32> to vector<32x1xf32>
    %4 = vector.extract_strided_slice %2 {offsets = [0, 1], sizes = [32, 1], strides = [1, 1]} : vector<32x3xf32> to vector<32x1xf32>
    %c0_4 = arith.constant 0 : index
    %c0_5 = arith.constant 0 : index
    %5 = vector.load %arg2[%c0_4, %c0_5] : memref<32x96xf32, #tpu.memory_space<vmem>>, vector<32x96xf32>
    %6 = vector.extract_strided_slice %2 {offsets = [0, 2], sizes = [32, 1], strides = [1, 1]} : vector<32x3xf32> to vector<32x1xf32>
    %7 = vector.broadcast %3 : vector<32x1xf32> to vector<32x16xf32>
    %8 = arith.mulf %1, %7 : vector<32x16xf32>
    %9 = vector.broadcast %4 : vector<32x1xf32> to vector<32x16xf32>
    %10 = arith.addf %8, %9 : vector<32x16xf32>
    %cst = arith.constant 0.000000e+00 : f32
    %11 = vector.broadcast %cst : f32 to vector<32x16xf32>
    %12 = arith.maximumf %10, %11 : vector<32x16xf32>
    %cst_6 = arith.constant 0.000000e+00 : f32
    %13 = vector.broadcast %cst_6 : f32 to vector<32x2xf32>
    %14 = vector.extract_strided_slice %12 {offsets = [0, 0], sizes = [32, 14], strides = [1, 1]} : vector<32x16xf32> to vector<32x14xf32>
    %15 = tpu.concatenate %13, %14 in 1 : vector<32x2xf32>, vector<32x14xf32> -> vector<32x16xf32>
    %16 = vector.extract_strided_slice %12 {offsets = [0, 2], sizes = [32, 14], strides = [1, 1]} : vector<32x16xf32> to vector<32x14xf32>
    %cst_7 = arith.constant 0.000000e+00 : f32
    %17 = vector.broadcast %cst_7 : f32 to vector<32x2xf32>
    %18 = tpu.concatenate %16, %17 in 1 : vector<32x14xf32>, vector<32x2xf32> -> vector<32x16xf32>
    %19 = tpu.concatenate %15, %12, %18 in 0 : vector<32x16xf32>, vector<32x16xf32>, vector<32x16xf32> -> vector<96x16xf32>
    %cst_8 = arith.constant dense<0.000000e+00> : vector<32x16xf32>
    %20 = tpu.matmul %5, %19, %cst_8 {dimension_numbers = #tpu.dot_dimension_numbers<[1], [0], [0], [1], [0, 0, 1, 1], [], []>} : vector<32x96xf32>, vector<96x16xf32>, vector<32x16xf32> -> vector<32x16xf32>
    %21 = vector.broadcast %6 : vector<32x1xf32> to vector<32x16xf32>
    %22 = arith.addf %20, %21 : vector<32x16xf32>
    %cst_9 = arith.constant dense<0.000000e+00> : vector<32xf32>
    %23 = vector.multi_reduction <add>, %22, %cst_9 [1] : vector<32x16xf32> to vector<32xf32>
    %24 = vector.shape_cast %23 : vector<32xf32> to vector<32x1xf32>
    %25 = arith.mulf %22, %22 : vector<32x16xf32>
    %cst_10 = arith.constant dense<0.000000e+00> : vector<32xf32>
    %26 = vector.multi_reduction <add>, %25, %cst_10 [1] : vector<32x16xf32> to vector<32xf32>
    %27 = vector.shape_cast %26 : vector<32xf32> to vector<32x1xf32>
    %28 = tpu.concatenate %24, %27 in 1 : vector<32x1xf32>, vector<32x1xf32> -> vector<32x2xf32>
    %c0_11 = arith.constant 0 : index
    %c0_12 = arith.constant 0 : index
    %c0_13 = arith.constant 0 : index
    %29 = vector.load %arg4[%c0_11, %c0_12, %c0_13] : memref<1x32x2xf32, #tpu.memory_space<vmem>>, vector<1x32x2xf32>
    %30 = vector.shape_cast %29 : vector<1x32x2xf32> to vector<32x2xf32>
    %31 = vector.shape_cast %28 : vector<32x2xf32> to vector<1x32x2xf32>
    tpu.vector_store %arg4[%c0_11, %c0_12, %c0_13], %31 {strides = array<i32>} : memref<1x32x2xf32, #tpu.memory_space<vmem>>, vector<1x32x2xf32>,
    return
  }
  func.func @transform_0(%arg0: i32) -> (i32, i32, i32) {
    %c0_i32 = arith.constant 0 : i32
    %c0_i32_0 = arith.constant 0 : i32
    %c0_i32_1 = arith.constant 0 : i32
    return %arg0, %c0_i32, %c0_i32_0 : i32, i32, i32
  }
  func.func @transform_1(%arg0: i32) -> (i32, i32) {
    %c0_i32 = arith.constant 0 : i32
    %c0_i32_0 = arith.constant 0 : i32
    %c0_i32_1 = arith.constant 0 : i32
    return %c0_i32, %c0_i32_0 : i32, i32
  }
  func.func @transform_2(%arg0: i32) -> (i32, i32) {
    %c0_i32 = arith.constant 0 : i32
    %c0_i32_0 = arith.constant 0 : i32
    %c0_i32_1 = arith.constant 0 : i32
    return %c0_i32, %c0_i32_0 : i32, i32
  }
  func.func @transform_3(%arg0: i32) -> (i32, i32, i32) {
    %c0_i32 = arith.constant 0 : i32
    %c0_i32_0 = arith.constant 0 : i32
    %c0_i32_1 = arith.constant 0 : i32
    return %arg0, %c0_i32, %c0_i32_0 : i32, i32, i32
  }
}

module attributes {stable_mosaic.version = 11 : i64} {
  func.func @_fused_kernel(%arg0: i32, %arg1: memref<1x32x16xf32, #tpu.memory_space<vmem>>, %arg2: memref<32x96xf32, #tpu.memory_space<vmem>>, %arg3: memref<32x96xf32, #tpu.memory_space<vmem>>, %arg4: memref<32x6xf32, #tpu.memory_space<vmem>>, %arg5: memref<1x32x16xf32, #tpu.memory_space<vmem>>) attributes {dimension_semantics = [#tpu.dimension_semantics<parallel>], iteration_bounds = array<i64: 2>, scalar_prefetch = 0 : i64, scratch_operands = 0 : i64, tpu.core_type = #tpu.core_type<tc>, window_params = [{transform_indices = @transform_0, window_bounds = array<i64: 1, 32, 16>}, {pipeline_mode = #tpu.pipeline_mode<synchronous>, transform_indices = @transform_1, window_bounds = array<i64: 32, 96>}, {pipeline_mode = #tpu.pipeline_mode<synchronous>, transform_indices = @transform_2, window_bounds = array<i64: 32, 96>}, {pipeline_mode = #tpu.pipeline_mode<synchronous>, transform_indices = @transform_3, window_bounds = array<i64: 32, 6>}, {transform_indices = @transform_4, window_bounds = array<i64: 1, 32, 16>}]} {
    %c0 = arith.constant 0 : index
    %c0_0 = arith.constant 0 : index
    %c0_1 = arith.constant 0 : index
    %0 = vector.load %arg1[%c0, %c0_0, %c0_1] : memref<1x32x16xf32, #tpu.memory_space<vmem>>, vector<1x32x16xf32>
    %1 = vector.shape_cast %0 : vector<1x32x16xf32> to vector<32x16xf32>
    %c0_2 = arith.constant 0 : index
    %c0_3 = arith.constant 0 : index
    %2 = vector.load %arg4[%c0_2, %c0_3] : memref<32x6xf32, #tpu.memory_space<vmem>>, vector<32x6xf32>
    %3 = vector.extract_strided_slice %2 {offsets = [0, 0], sizes = [32, 1], strides = [1, 1]} : vector<32x6xf32> to vector<32x1xf32>
    %4 = vector.extract_strided_slice %2 {offsets = [0, 1], sizes = [32, 1], strides = [1, 1]} : vector<32x6xf32> to vector<32x1xf32>
    %c0_4 = arith.constant 0 : index
    %c0_5 = arith.constant 0 : index
    %5 = vector.load %arg2[%c0_4, %c0_5] : memref<32x96xf32, #tpu.memory_space<vmem>>, vector<32x96xf32>
    %6 = vector.extract_strided_slice %2 {offsets = [0, 2], sizes = [32, 1], strides = [1, 1]} : vector<32x6xf32> to vector<32x1xf32>
    %7 = vector.broadcast %3 : vector<32x1xf32> to vector<32x16xf32>
    %8 = arith.mulf %1, %7 : vector<32x16xf32>
    %9 = vector.broadcast %4 : vector<32x1xf32> to vector<32x16xf32>
    %10 = arith.addf %8, %9 : vector<32x16xf32>
    %cst = arith.constant 0.000000e+00 : f32
    %11 = vector.broadcast %cst : f32 to vector<32x16xf32>
    %12 = arith.maximumf %10, %11 : vector<32x16xf32>
    %cst_6 = arith.constant 0.000000e+00 : f32
    %13 = vector.broadcast %cst_6 : f32 to vector<32x2xf32>
    %14 = vector.extract_strided_slice %12 {offsets = [0, 0], sizes = [32, 14], strides = [1, 1]} : vector<32x16xf32> to vector<32x14xf32>
    %15 = tpu.concatenate %13, %14 in 1 : vector<32x2xf32>, vector<32x14xf32> -> vector<32x16xf32>
    %16 = vector.extract_strided_slice %12 {offsets = [0, 2], sizes = [32, 14], strides = [1, 1]} : vector<32x16xf32> to vector<32x14xf32>
    %cst_7 = arith.constant 0.000000e+00 : f32
    %17 = vector.broadcast %cst_7 : f32 to vector<32x2xf32>
    %18 = tpu.concatenate %16, %17 in 1 : vector<32x14xf32>, vector<32x2xf32> -> vector<32x16xf32>
    %19 = tpu.concatenate %15, %12, %18 in 0 : vector<32x16xf32>, vector<32x16xf32>, vector<32x16xf32> -> vector<96x16xf32>
    %cst_8 = arith.constant dense<0.000000e+00> : vector<32x16xf32>
    %20 = tpu.matmul %5, %19, %cst_8 {dimension_numbers = #tpu.dot_dimension_numbers<[1], [0], [0], [1], [0, 0, 1, 1], [], []>} : vector<32x96xf32>, vector<96x16xf32>, vector<32x16xf32> -> vector<32x16xf32>
    %21 = vector.broadcast %6 : vector<32x1xf32> to vector<32x16xf32>
    %22 = arith.addf %20, %21 : vector<32x16xf32>
    %23 = vector.extract_strided_slice %2 {offsets = [0, 3], sizes = [32, 1], strides = [1, 1]} : vector<32x6xf32> to vector<32x1xf32>
    %24 = vector.extract_strided_slice %2 {offsets = [0, 4], sizes = [32, 1], strides = [1, 1]} : vector<32x6xf32> to vector<32x1xf32>
    %c0_9 = arith.constant 0 : index
    %c0_10 = arith.constant 0 : index
    %25 = vector.load %arg3[%c0_9, %c0_10] : memref<32x96xf32, #tpu.memory_space<vmem>>, vector<32x96xf32>
    %26 = vector.extract_strided_slice %2 {offsets = [0, 5], sizes = [32, 1], strides = [1, 1]} : vector<32x6xf32> to vector<32x1xf32>
    %27 = vector.broadcast %23 : vector<32x1xf32> to vector<32x16xf32>
    %28 = arith.mulf %22, %27 : vector<32x16xf32>
    %29 = vector.broadcast %24 : vector<32x1xf32> to vector<32x16xf32>
    %30 = arith.addf %28, %29 : vector<32x16xf32>
    %cst_11 = arith.constant 0.000000e+00 : f32
    %31 = vector.broadcast %cst_11 : f32 to vector<32x16xf32>
    %32 = arith.maximumf %30, %31 : vector<32x16xf32>
    %cst_12 = arith.constant 0.000000e+00 : f32
    %33 = vector.broadcast %cst_12 : f32 to vector<32x2xf32>
    %34 = vector.extract_strided_slice %32 {offsets = [0, 0], sizes = [32, 14], strides = [1, 1]} : vector<32x16xf32> to vector<32x14xf32>
    %35 = tpu.concatenate %33, %34 in 1 : vector<32x2xf32>, vector<32x14xf32> -> vector<32x16xf32>
    %36 = vector.extract_strided_slice %32 {offsets = [0, 2], sizes = [32, 14], strides = [1, 1]} : vector<32x16xf32> to vector<32x14xf32>
    %cst_13 = arith.constant 0.000000e+00 : f32
    %37 = vector.broadcast %cst_13 : f32 to vector<32x2xf32>
    %38 = tpu.concatenate %36, %37 in 1 : vector<32x14xf32>, vector<32x2xf32> -> vector<32x16xf32>
    %39 = tpu.concatenate %35, %32, %38 in 0 : vector<32x16xf32>, vector<32x16xf32>, vector<32x16xf32> -> vector<96x16xf32>
    %cst_14 = arith.constant dense<0.000000e+00> : vector<32x16xf32>
    %40 = tpu.matmul %25, %39, %cst_14 {dimension_numbers = #tpu.dot_dimension_numbers<[1], [0], [0], [1], [0, 0, 1, 1], [], []>} : vector<32x96xf32>, vector<96x16xf32>, vector<32x16xf32> -> vector<32x16xf32>
    %41 = vector.broadcast %26 : vector<32x1xf32> to vector<32x16xf32>
    %42 = arith.addf %40, %41 : vector<32x16xf32>
    %43 = arith.addf %42, %1 : vector<32x16xf32>
    %c0_15 = arith.constant 0 : index
    %c0_16 = arith.constant 0 : index
    %c0_17 = arith.constant 0 : index
    %44 = vector.load %arg5[%c0_15, %c0_16, %c0_17] : memref<1x32x16xf32, #tpu.memory_space<vmem>>, vector<1x32x16xf32>
    %45 = vector.shape_cast %44 : vector<1x32x16xf32> to vector<32x16xf32>
    %46 = vector.shape_cast %43 : vector<32x16xf32> to vector<1x32x16xf32>
    tpu.vector_store %arg5[%c0_15, %c0_16, %c0_17], %46 {strides = array<i32>} : memref<1x32x16xf32, #tpu.memory_space<vmem>>, vector<1x32x16xf32>,
    return
  }
  func.func @transform_0(%arg0: i32) -> (i32, i32, i32) {
    %c0_i32 = arith.constant 0 : i32
    %c0_i32_0 = arith.constant 0 : i32
    %c0_i32_1 = arith.constant 0 : i32
    return %arg0, %c0_i32, %c0_i32_0 : i32, i32, i32
  }
  func.func @transform_1(%arg0: i32) -> (i32, i32) {
    %c0_i32 = arith.constant 0 : i32
    %c0_i32_0 = arith.constant 0 : i32
    %c0_i32_1 = arith.constant 0 : i32
    return %c0_i32, %c0_i32_0 : i32, i32
  }
  func.func @transform_2(%arg0: i32) -> (i32, i32) {
    %c0_i32 = arith.constant 0 : i32
    %c0_i32_0 = arith.constant 0 : i32
    %c0_i32_1 = arith.constant 0 : i32
    return %c0_i32, %c0_i32_0 : i32, i32
  }
  func.func @transform_3(%arg0: i32) -> (i32, i32) {
    %c0_i32 = arith.constant 0 : i32
    %c0_i32_0 = arith.constant 0 : i32
    %c0_i32_1 = arith.constant 0 : i32
    return %c0_i32, %c0_i32_0 : i32, i32
  }
  func.func @transform_4(%arg0: i32) -> (i32, i32, i32) {
    %c0_i32 = arith.constant 0 : i32
    %c0_i32_0 = arith.constant 0 : i32
    %c0_i32_1 = arith.constant 0 : i32
    return %arg0, %c0_i32, %c0_i32_0 : i32, i32, i32
  }
}

</mosaic_0001>

<llo_original>
// kernel: residual_block.2
$region0: #{residual_block.2}
  #allocation0 [shape = 'u32[]', space=smem, size = 0x4, offset = 0x4, fixed_abs, tag = 'smem constant byte address 0x4 - core index']
  #allocation1 [shape = 'u32[72,128]{1,0:T(1,128)}', space=vmem, size = 0x9000, scoped, tag = 'internal scratch']
  %s0 = inlined_call_operand.vmem [shape: f32[2,32,16], index: 0, kind: input, shape index: {}]
  %s1 = inlined_call_operand.vmem [shape: f32[32,96], index: 1, kind: input, shape index: {}]
  %s2 = inlined_call_operand.vmem [shape: f32[32,3], index: 2, kind: input, shape index: {}]
  %s3 = inlined_call_operand.vmem [shape: f32[2,32,2], index: 3, kind: output, shape index: {}]
  %s4 = sld [smem:[#allocation0]]
  $region45: #{residual_block.2} parent=0
    _
  %s6 = ssub.s32 1, %s4
  %s7 = scalar_select 0, %s6, %s4
  loop: start=0, step=1, limit=4
  $region2: #{residual_block.2} parent=0 // loop_pre_header
    _
  $region3: #{residual_block.2} parent=0 // loop_header
    %s9 = sphi 0, %s13
    %p10 = scmp.ge.s32.totalorder %s9, 4
    %s19 = sphi 0, %s21
    %s22 = sphi 0, %s19
    %s23 = sphi 0, %s22
    %s39 = sphi 0, %s23
    %s43 = sphi 0, %s43
    %s45 = sphi 0, %s43
    %s46 = sphi 0, %s45
    %s60 = sphi 0, %s46
    %s64 = sphi 0, %s64
    %s66 = sphi 0, %s64
    %s67 = sphi 0, %s66
    %s81 = sphi 0, %s67
    %s87 = sphi 0, %s89
    %s90 = sphi 0, %s87
    %s91 = sphi 0, %s90
    %s107 = sphi 0, %s91
  $region4: #{residual_block.2} parent=0 // loop_header_branch
    %12 = sbr.rel (%p10) target = $region8
  $region5: #{residual_block.2} parent=0 // loop_body
    %s14 = ssub.s32 %s9, 1
    %s15 = ssub.s32 %s9, 2
    %s16 = sadd.s32 %s9, 1
    %s17 = ssub.s32 %s9, %s16
    %p18 = scmp.eq.s32.totalorder %s17, 0
    %s20 = sadd.s32 %s19, 1
    %s21 = scalar_select %p18, %s19, %s20
    %p24 = pneg %p18
    %p25 = scmp.eq.s32.totalorder %s9, 1
    %p26 = por %p24, %p25
    %p27 = scmp.ne.s32.totalorder %s19, %s22
    %p28 = scmp.eq.s32.totalorder %s9, 0
    %p29 = por %p27, %p28
    %p30 = scmp.ne.s32.totalorder %s19, %s22
    %p31 = scmp.eq.s32.totalorder %s14, 1
    %p32 = por %p30, %p31
    %p33 = scmp.ne.s32.totalorder %s22, %s23
    %p34 = scmp.eq.s32.totalorder %s14, 0
    %p35 = por %p33, %p34
    %p36 = scmp.ne.s32.totalorder %s22, %s23
    %p37 = scmp.eq.s32.totalorder %s15, 1
    %p38 = por %p36, %p37
    %p40 = scmp.ne.s32.totalorder %s23, %s39
    %p41 = scmp.eq.s32.totalorder %s15, 0
    %p42 = por %p40, %p41
    %s44 = sadd.s32 %s43, 1
    %p47 = scmp.eq.s32.totalorder %s9, 1
    %p48 = scmp.ne.s32.totalorder %s43, %s45
    %p49 = scmp.eq.s32.totalorder %s9, 0
    %p50 = por %p48, %p49
    %p51 = scmp.ne.s32.totalorder %s43, %s45
    %p52 = scmp.eq.s32.totalorder %s14, 1
    %p53 = por %p51, %p52
    %p54 = scmp.ne.s32.totalorder %s45, %s46
    %p55 = scmp.eq.s32.totalorder %s14, 0
    %p56 = por %p54, %p55
    %p57 = scmp.ne.s32.totalorder %s45, %s46
    %p58 = scmp.eq.s32.totalorder %s15, 1
    %p59 = por %p57, %p58
    %p61 = scmp.ne.s32.totalorder %s46, %s60
    %p62 = scmp.eq.s32.totalorder %s15, 0
    %p63 = por %p61, %p62
    %s65 = sadd.s32 %s64, 1
    %p68 = scmp.eq.s32.totalorder %s9, 1
    %p69 = scmp.ne.s32.totalorder %s64, %s66
    %p70 = scmp.eq.s32.totalorder %s9, 0
    %p71 = por %p69, %p70
    %p72 = scmp.ne.s32.totalorder %s64, %s66
    %p73 = scmp.eq.s32.totalorder %s14, 1
    %p74 = por %p72, %p73
    %p75 = scmp.ne.s32.totalorder %s66, %s67
    %p76 = scmp.eq.s32.totalorder %s14, 0
    %p77 = por %p75, %p76
    %p78 = scmp.ne.s32.totalorder %s66, %s67
    %p79 = scmp.eq.s32.totalorder %s15, 1
    %p80 = por %p78, %p79
    %p82 = scmp.ne.s32.totalorder %s67, %s81
    %p83 = scmp.eq.s32.totalorder %s15, 0
    %p84 = por %p82, %p83
    %s85 = ssub.s32 %s9, %s16
    %p86 = scmp.eq.s32.totalorder %s85, 0
    %s88 = sadd.s32 %s87, 1
    %s89 = scalar_select %p86, %s87, %s88
    %p92 = pneg %p86
    %p93 = scmp.eq.s32.totalorder %s9, 1
    %p94 = por %p92, %p93
    %p95 = scmp.ne.s32.totalorder %s87, %s90
    %p96 = scmp.eq.s32.totalorder %s9, 0
    %p97 = por %p95, %p96
    %p98 = scmp.ne.s32.totalorder %s87, %s90
    %p99 = scmp.eq.s32.totalorder %s14, 1
    %p100 = por %p98, %p99
    %p101 = scmp.ne.s32.totalorder %s90, %s91
    %p102 = scmp.eq.s32.totalorder %s14, 0
    %p103 = por %p101, %p102
    %p104 = scmp.ne.s32.totalorder %s90, %s91
    %p105 = scmp.eq.s32.totalorder %s15, 1
    %p106 = por %p104, %p105
    %p108 = scmp.ne.s32.totalorder %s91, %s107
    %p109 = scmp.eq.s32.totalorder %s15, 0
    %p110 = por %p108, %p109
    %p111 = scmp.le.s32.totalorder 1, %s9
    %p112 = scmp.lt.s32.totalorder %s9, 3
    %p113 = pnand %p111, %p112
    %p114 = pneg %p113
    // Predicated region
    $region9: #{residual_block.2} parent=5 // pred_check
      _
    $region10: #{residual_block.2} parent=5 // pred_check_branch
      %116 = sbr.rel (%p113) target = $region12
    $region11: #{residual_block.2} parent=5 // pred_region
      %s117 = ssub.s32 %s9, 1
      // Predicated region
      $region13: #{residual_block.2} parent=11 // pred_check
        %p118 = pneg %p56
      $region14: #{residual_block.2} parent=11 // pred_check_branch
        %120 = sbr.rel (%p118) target = $region16
      $region15: #{residual_block.2} parent=11 // pred_region
        _
      $region16: #{residual_block.2} parent=11 // pred_fallthru
        _
      // Predicated region
      $region17: #{residual_block.2} parent=11 // pred_check
        %p121 = pneg %p77
      $region18: #{residual_block.2} parent=11 // pred_check_branch
        %123 = sbr.rel (%p121) target = $region20
      $region19: #{residual_block.2} parent=11 // pred_region
        _
      $region20: #{residual_block.2} parent=11 // pred_fallthru
        _
    $region12: #{residual_block.2} parent=5 // pred_fallthru
      _
    %p124 = scmp.lt.s32.totalorder %s9, 2
    // Predicated region
    $region21: #{residual_block.2} parent=5 // pred_check
      %p125 = pneg %p124
    $region22: #{residual_block.2} parent=5 // pred_check_branch
      %127 = sbr.rel (%p125) target = $region24
    $region23: #{residual_block.2} parent=5 // pred_region
      // Predicated region
      $region25: #{residual_block.2} parent=23 // pred_check
        %p128 = pneg %p29
      $region26: #{residual_block.2} parent=23 // pred_check_branch
        %130 = sbr.rel (%p128) target = $region28
      $region27: #{residual_block.2} parent=23 // pred_region
        %p131 = scmp.lt.s32.totalorder %s9, 1
        %s132 = scalar_select %p131, %s9, 1
        %s133 = smul.addr %s132, 4
        %s134 = smul.addr %s133, 8
        %s135 = scalar_lea.vmem %s0, %s134
      $region28: #{residual_block.2} parent=23 // pred_fallthru
        _
    $region24: #{residual_block.2} parent=5 // pred_fallthru
      _
    %p136 = scmp.le.s32.totalorder 1, %s9
    %p137 = scmp.lt.s32.totalorder %s9, 3
    %p138 = pnand %p136, %p137
    %p139 = pneg %p138
    // Predicated region
    $region29: #{residual_block.2} parent=5 // pred_check
      _
    $region30: #{residual_block.2} parent=5 // pred_check_branch
      %141 = sbr.rel (%p138) target = $region32
    $region31: #{residual_block.2} parent=5 // pred_region
      %s142 = ssub.s32 %s9, 1
      %p143 = scmp.lt.s32.totalorder %s14, 1
      %s144 = scalar_select %p143, %s14, 1
      %s145 = smul.addr %s144, 4
      %s146 = smul.addr %s145, 8
      %s147 = scalar_lea.vmem %s0, %s146
      %p148 = pneg %p35
      %p149 = pneg %p32
      %p150 = pneg %p56
      %p151 = pneg %p53
      %p152 = pneg %p77
      %p153 = pneg %p74
      %p154 = pneg %p103
      %p155 = pneg %p100
      %p156 = scmp.lt.s32.totalorder %s14, 1
      %s157 = scalar_select %p156, %s14, 1
      %s158 = smul.addr %s157, 4
      %s159 = smul.addr %s158, 8
      %s160 = scalar_lea.vmem %s3, %s159
      %p161 = scmp.lt.s32.totalorder %s14, 1
      %s162 = scalar_select %p161, %s14, 1
      %s163 = smul.addr %s162, 4
      %s164 = smul.addr %s163, 8
      %s165 = scalar_lea.vmem %s0, %s164
      %p166 = scmp.lt.s32.totalorder %s14, 1
      %s167 = scalar_select %p166, %s14, 1
      %s168 = smul.addr %s167, 4
      %s169 = smul.addr %s168, 8
      %s170 = scalar_lea.vmem %s3, %s169
      %v171 = vld [vmem:[%s165] sm:$0xff]
      %v172 = vld [vmem:[%s165 + $0x8] sm:$0xff]
      %v173 = vld [vmem:[%s165 + $0x10] sm:$0xff]
      %v174 = vld [vmem:[%s165 + $0x18] sm:$0xff]
      %v175 = vld [vmem:[%s2] sm:$0xff]
      %v176 = vld [vmem:[%s2 + $0x8] sm:$0xff]
      %v177 = vld [vmem:[%s2 + $0x10] sm:$0xff]
      %v178 = vld [vmem:[%s2 + $0x18] sm:$0xff]
      %v179 = vld [vmem:[%s1] sm:$0xff]
      %v180 = vld [vmem:[%s1 + $0x8] sm:$0xff]
      %v181 = vld [vmem:[%s1 + $0x10] sm:$0xff]
      %v182 = vld [vmem:[%s1 + $0x18] sm:$0xff]
      %184 = vset.pattern.permute.xlu0 0
      %185 = vperm.xlu0 %184, %v175
      %v186 = vpop.permute.xlu0 %185
      %189 = vset.pattern.permute.xlu0 0
      %190 = vperm.xlu0 %189, %v176
      %v191 = vpop.permute.xlu0 %190
      %194 = vset.pattern.permute.xlu0 0
      %195 = vperm.xlu0 %194, %v177
      %v196 = vpop.permute.xlu0 %195
      %199 = vset.pattern.permute.xlu0 0
      %200 = vperm.xlu0 %199, %v178
      %v201 = vpop.permute.xlu0 %200
      %v203 = vmul.f32 %v171, %v186
      %v204 = vmul.f32 %v172, %v191
      %v205 = vmul.f32 %v173, %v196
      %v206 = vmul.f32 %v174, %v201
      %207 = vset.pattern.permute.xlu0 1
      %208 = vperm.xlu0 %207, %v175
      %v209 = vpop.permute.xlu0 %208
      %211 = vset.pattern.permute.xlu0 1
      %212 = vperm.xlu0 %211, %v176
      %v213 = vpop.permute.xlu0 %212
      %215 = vset.pattern.permute.xlu0 1
      %216 = vperm.xlu0 %215, %v177
      %v217 = vpop.permute.xlu0 %216
      %219 = vset.pattern.permute.xlu0 1
      %220 = vperm.xlu0 %219, %v178
      %v221 = vpop.permute.xlu0 %220
      %v223 = vadd.f32 %v203, %v209
      %v224 = vadd.f32 %v204, %v213
      %v225 = vadd.f32 %v205, %v217
      %v226 = vadd.f32 %v206, %v221
      %v227 = vmax.f32 %v223, 0.0
      %v228 = vmax.f32 %v224, 0.0
      %v229 = vmax.f32 %v225, 0.0
      %v230 = vmax.f32 %v226, 0.0
      %235 = vrot.lane.b32.xlu0 %v227, 2
      %v236 = vpop.permute.xlu0 %235
      %237 = vrot.lane.b32.xlu0 %v228, 2
      %v238 = vpop.permute.xlu0 %237
      %239 = vrot.lane.b32.xlu0 %v229, 2
      %v240 = vpop.permute.xlu0 %239
      %241 = vrot.lane.b32.xlu0 %v230, 2
      %v242 = vpop.permute.xlu0 %241
      %vm247 = vcmask 15360
      %v248 = vsel %vm247, 0.0, %v236
      %v249 = vsel %vm247, 0.0, %v238
      %v250 = vsel %vm247, 0.0, %v240
      %v251 = vsel %vm247, 0.0, %v242
      %252 = vrot.lane.b32.xlu0 %v227, 126
      %v253 = vpop.permute.xlu0 %252
      %254 = vrot.lane.b32.xlu0 %v228, 126
      %v255 = vpop.permute.xlu0 %254
      %256 = vrot.lane.b32.xlu0 %v229, 126
      %v257 = vpop.permute.xlu0 %256
      %258 = vrot.lane.b32.xlu0 %v230, 126
      %v259 = vpop.permute.xlu0 %258
      %vm264 = vcmask 113664
      %v265 = vsel %vm264, %v253, 0.0
      %v266 = vsel %vm264, %v255, 0.0
      %v267 = vsel %vm264, %v257, 0.0
      %v268 = vsel %vm264, %v259, 0.0
      %269 = vset.pattern.permute.xlu0 2
      %270 = vperm.xlu0 %269, %v175
      %v271 = vpop.permute.xlu0 %270
      %273 = vset.pattern.permute.xlu0 2
      %274 = vperm.xlu0 %273, %v176
      %v275 = vpop.permute.xlu0 %274
      %277 = vset.pattern.permute.xlu0 2
      %278 = vperm.xlu0 %277, %v177
      %v279 = vpop.permute.xlu0 %278
      %281 = vset.pattern.permute.xlu0 2
      %282 = vperm.xlu0 %281, %v178
      %v283 = vpop.permute.xlu0 %282
      %vm285 = vcmask 785408
      %v287 = vsel %vm285, %v179, 0
      %v290 = vsel %vm285, %v180, 0
      %v293 = vsel %vm285, %v181, 0
      %v296 = vsel %vm285, %v182, 0
      %298 = vmatpush.msra.mxu0 0.0
      %299 = vmatpush.msra.mxu0 0.0
      %300 = vmatpush.msra.mxu0 0.0
      %301 = vmatpush.msra.mxu0 0.0
      %302 = vmatpush.msra.mxu0 %v268
      %303 = vmatpush.msra.mxu0 %v267
      %304 = vmatpush.msra.mxu0 %v266
      %305 = vmatpush.msra.mxu0 %v265
      %306 = vmatpush.msra.mxu0 %v230
      %307 = vmatpush.msra.mxu0 %v229
      %308 = vmatpush.msra.mxu0 %v228
      %309 = vmatpush.msra.mxu0 %v227
      %310 = vmatpush.msra.mxu0 %v251
      %311 = vmatpush.msra.mxu0 %v250
      %312 = vmatpush.msra.mxu0 %v249
      %313 = vmatpush.msra.mxu0 %v248
      %314 = vmatmul.f32.gmra.mxu0 %v287
      %v315 = vpop.f32.mrf.mxu0
      %v316 = vadd.f32 %v271, %v315
      %317 = vmatmul.f32.gmra.mxu0 %v290
      %v318 = vpop.f32.mrf.mxu0
      %v319 = vadd.f32 %v275, %v318
      %320 = vmatmul.f32.gmra.mxu0 %v293
      %v321 = vpop.f32.mrf.mxu0
      %v322 = vadd.f32 %v279, %v321
      %323 = vmatmul.f32.gmra.mxu0 %v296
      %v324 = vpop.f32.mrf.mxu0
      %v325 = vadd.f32 %v283, %v324
      %326 = vdwg.mxu0
      %vm327 = vcmask 130048
      %v328 = vsel %vm327, %v316, 0.0
      %329 = vadd.xlane.f32.xlu0 %v328
      %v330 = vpop.xlane.xlu0 %329
      %v331 = vsel %vm327, %v319, 0.0
      %332 = vadd.xlane.f32.xlu0 %v331
      %v333 = vpop.xlane.xlu0 %332
      %v334 = vsel %vm327, %v322, 0.0
      %335 = vadd.xlane.f32.xlu0 %v334
      %v336 = vpop.xlane.xlu0 %335
      %v337 = vsel %vm327, %v325, 0.0
      %338 = vadd.xlane.f32.xlu0 %v337
      %v339 = vpop.xlane.xlu0 %338
      %v340 = vmul.f32 %v316, %v316
      %v341 = vmul.f32 %v319, %v319
      %v342 = vmul.f32 %v322, %v322
      %v343 = vmul.f32 %v325, %v325
      %v344 = vsel %vm327, %v340, 0.0
      %345 = vadd.xlane.f32.xlu0 %v344
      %v346 = vpop.xlane.xlu0 %345
      %v347 = vsel %vm327, %v341, 0.0
      %348 = vadd.xlane.f32.xlu0 %v347
      %v349 = vpop.xlane.xlu0 %348
      %v350 = vsel %vm327, %v342, 0.0
      %351 = vadd.xlane.f32.xlu0 %v350
      %v352 = vpop.xlane.xlu0 %351
      %v353 = vsel %vm327, %v343, 0.0
      %354 = vadd.xlane.f32.xlu0 %v353
      %v355 = vpop.xlane.xlu0 %354
      %vm356 = vcmask 7168
      %v357 = vsel %vm356, %v330, %v346
      %v358 = vsel %vm356, %v333, %v349
      %v359 = vsel %vm356, %v336, %v352
      %v360 = vsel %vm356, %v339, %v355
      %361 = vst.msk [vmem:[%s170] sm:$0xff] %vm247, %v357
      %362 = vst.msk [vmem:[%s170 + $0x8] sm:$0xff] %vm247, %v358
      %363 = vst.msk [vmem:[%s170 + $0x10] sm:$0xff] %vm247, %v359
      %364 = vst.msk [vmem:[%s170 + $0x18] sm:$0xff] %vm247, %v360
      %p365 = scmp.lt.s32.totalorder %s14, 1
      %s366 = scalar_select %p365, %s14, 1
      %s367 = smul.addr %s366, 4
      %s368 = smul.addr %s367, 8
      %s369 = scalar_lea.vmem %s3, %s368
      // Predicated region
      $region33: #{residual_block.2} parent=31 // pred_check
        %p370 = pneg %p100
      $region34: #{residual_block.2} parent=31 // pred_check_branch
        %372 = sbr.rel (%p370) target = $region36
      $region35: #{residual_block.2} parent=31 // pred_region
        _
      $region36: #{residual_block.2} parent=31 // pred_fallthru
        _
    $region32: #{residual_block.2} parent=5 // pred_fallthru
      _
    %p373 = scmp.le.s32.totalorder 2, %s9
    // Predicated region
    $region37: #{residual_block.2} parent=5 // pred_check
      %p374 = pneg %p373
    $region38: #{residual_block.2} parent=5 // pred_check_branch
      %376 = sbr.rel (%p374) target = $region40
    $region39: #{residual_block.2} parent=5 // pred_region
      %s377 = ssub.s32 %s9, 2
      // Predicated region
      $region41: #{residual_block.2} parent=39 // pred_check
        %p378 = pneg %p106
      $region42: #{residual_block.2} parent=39 // pred_check_branch
        %380 = sbr.rel (%p378) target = $region44
      $region43: #{residual_block.2} parent=39 // pred_region
        %p381 = scmp.lt.s32.totalorder %s15, 1
        %s382 = scalar_select %p381, %s15, 1
        %s383 = smul.addr %s382, 4
        %s384 = smul.addr %s383, 8
        %s385 = scalar_lea.vmem %s3, %s384
      $region44: #{residual_block.2} parent=39 // pred_fallthru
        _
    $region40: #{residual_block.2} parent=5 // pred_fallthru
      _
  $region6: #{residual_block.2} parent=0 // loop_footer
    %s13 = sadd.s32 1, %s9
  $region7: #{residual_block.2} parent=0 // loop_footer_branch
    %8 = sbr.rel target = $region3
  $region8: #{residual_block.2} parent=0 // loop_exit
    _

// kernel: residual_block.3
$region0: #{residual_block.3}
  #allocation0 [shape = 'u32[]', space=smem, size = 0x4, offset = 0x4, fixed_abs, tag = 'smem constant byte address 0x4 - core index']
  #allocation1 [shape = 'u32[72,128]{1,0:T(1,128)}', space=vmem, size = 0x9000, scoped, tag = 'internal scratch']
  %s0 = inlined_call_operand.vmem [shape: f32[2,32,16], index: 0, kind: input, shape index: {}]
  %s1 = inlined_call_operand.vmem [shape: f32[32,96], index: 1, kind: input, shape index: {}]
  %s2 = inlined_call_operand.vmem [shape: f32[32,96], index: 2, kind: input, shape index: {}]
  %s3 = inlined_call_operand.vmem [shape: f32[32,6], index: 3, kind: input, shape index: {}]
  %s4 = inlined_call_operand.vmem [shape: f32[2,32,16], index: 4, kind: output, shape index: {}]
  %s5 = sld [smem:[#allocation0]]
  $region49: #{residual_block.3} parent=0
    _
  %s7 = ssub.s32 1, %s5
  %s8 = scalar_select 0, %s7, %s5
  loop: start=0, step=1, limit=4
  $region2: #{residual_block.3} parent=0 // loop_pre_header
    _
  $region3: #{residual_block.3} parent=0 // loop_header
    %s10 = sphi 0, %s14
    %p11 = scmp.ge.s32.totalorder %s10, 4
    %s20 = sphi 0, %s22
    %s23 = sphi 0, %s20
    %s24 = sphi 0, %s23
    %s40 = sphi 0, %s24
    %s44 = sphi 0, %s44
    %s46 = sphi 0, %s44
    %s47 = sphi 0, %s46
    %s61 = sphi 0, %s47
    %s65 = sphi 0, %s65
    %s67 = sphi 0, %s65
    %s68 = sphi 0, %s67
    %s82 = sphi 0, %s68
    %s86 = sphi 0, %s86
    %s88 = sphi 0, %s86
    %s89 = sphi 0, %s88
    %s103 = sphi 0, %s89
    %s109 = sphi 0, %s111
    %s112 = sphi 0, %s109
    %s113 = sphi 0, %s112
    %s129 = sphi 0, %s113
  $region4: #{residual_block.3} parent=0 // loop_header_branch
    %13 = sbr.rel (%p11) target = $region8
  $region5: #{residual_block.3} parent=0 // loop_body
    %s15 = ssub.s32 %s10, 1
    %s16 = ssub.s32 %s10, 2
    %s17 = sadd.s32 %s10, 1
    %s18 = ssub.s32 %s10, %s17
    %p19 = scmp.eq.s32.totalorder %s18, 0
    %s21 = sadd.s32 %s20, 1
    %s22 = scalar_select %p19, %s20, %s21
    %p25 = pneg %p19
    %p26 = scmp.eq.s32.totalorder %s10, 1
    %p27 = por %p25, %p26
    %p28 = scmp.ne.s32.totalorder %s20, %s23
    %p29 = scmp.eq.s32.totalorder %s10, 0
    %p30 = por %p28, %p29
    %p31 = scmp.ne.s32.totalorder %s20, %s23
    %p32 = scmp.eq.s32.totalorder %s15, 1
    %p33 = por %p31, %p32
    %p34 = scmp.ne.s32.totalorder %s23, %s24
    %p35 = scmp.eq.s32.totalorder %s15, 0
    %p36 = por %p34, %p35
    %p37 = scmp.ne.s32.totalorder %s23, %s24
    %p38 = scmp.eq.s32.totalorder %s16, 1
    %p39 = por %p37, %p38
    %p41 = scmp.ne.s32.totalorder %s24, %s40
    %p42 = scmp.eq.s32.totalorder %s16, 0
    %p43 = por %p41, %p42
    %s45 = sadd.s32 %s44, 1
    %p48 = scmp.eq.s32.totalorder %s10, 1
    %p49 = scmp.ne.s32.totalorder %s44, %s46
    %p50 = scmp.eq.s32.totalorder %s10, 0
    %p51 = por %p49, %p50
    %p52 = scmp.ne.s32.totalorder %s44, %s46
    %p53 = scmp.eq.s32.totalorder %s15, 1
    %p54 = por %p52, %p53
    %p55 = scmp.ne.s32.totalorder %s46, %s47
    %p56 = scmp.eq.s32.totalorder %s15, 0
    %p57 = por %p55, %p56
    %p58 = scmp.ne.s32.totalorder %s46, %s47
    %p59 = scmp.eq.s32.totalorder %s16, 1
    %p60 = por %p58, %p59
    %p62 = scmp.ne.s32.totalorder %s47, %s61
    %p63 = scmp.eq.s32.totalorder %s16, 0
    %p64 = por %p62, %p63
    %s66 = sadd.s32 %s65, 1
    %p69 = scmp.eq.s32.totalorder %s10, 1
    %p70 = scmp.ne.s32.totalorder %s65, %s67
    %p71 = scmp.eq.s32.totalorder %s10, 0
    %p72 = por %p70, %p71
    %p73 = scmp.ne.s32.totalorder %s65, %s67
    %p74 = scmp.eq.s32.totalorder %s15, 1
    %p75 = por %p73, %p74
    %p76 = scmp.ne.s32.totalorder %s67, %s68
    %p77 = scmp.eq.s32.totalorder %s15, 0
    %p78 = por %p76, %p77
    %p79 = scmp.ne.s32.totalorder %s67, %s68
    %p80 = scmp.eq.s32.totalorder %s16, 1
    %p81 = por %p79, %p80
    %p83 = scmp.ne.s32.totalorder %s68, %s82
    %p84 = scmp.eq.s32.totalorder %s16, 0
    %p85 = por %p83, %p84
    %s87 = sadd.s32 %s86, 1
    %p90 = scmp.eq.s32.totalorder %s10, 1
    %p91 = scmp.ne.s32.totalorder %s86, %s88
    %p92 = scmp.eq.s32.totalorder %s10, 0
    %p93 = por %p91, %p92
    %p94 = scmp.ne.s32.totalorder %s86, %s88
    %p95 = scmp.eq.s32.totalorder %s15, 1
    %p96 = por %p94, %p95
    %p97 = scmp.ne.s32.totalorder %s88, %s89
    %p98 = scmp.eq.s32.totalorder %s15, 0
    %p99 = por %p97, %p98
    %p100 = scmp.ne.s32.totalorder %s88, %s89
    %p101 = scmp.eq.s32.totalorder %s16, 1
    %p102 = por %p100, %p101
    %p104 = scmp.ne.s32.totalorder %s89, %s103
    %p105 = scmp.eq.s32.totalorder %s16, 0
    %p106 = por %p104, %p105
    %s107 = ssub.s32 %s10, %s17
    %p108 = scmp.eq.s32.totalorder %s107, 0
    %s110 = sadd.s32 %s109, 1
    %s111 = scalar_select %p108, %s109, %s110
    %p114 = pneg %p108
    %p115 = scmp.eq.s32.totalorder %s10, 1
    %p116 = por %p114, %p115
    %p117 = scmp.ne.s32.totalorder %s109, %s112
    %p118 = scmp.eq.s32.totalorder %s10, 0
    %p119 = por %p117, %p118
    %p120 = scmp.ne.s32.totalorder %s109, %s112
    %p121 = scmp.eq.s32.totalorder %s15, 1
    %p122 = por %p120, %p121
    %p123 = scmp.ne.s32.totalorder %s112, %s113
    %p124 = scmp.eq.s32.totalorder %s15, 0
    %p125 = por %p123, %p124
    %p126 = scmp.ne.s32.totalorder %s112, %s113
    %p127 = scmp.eq.s32.totalorder %s16, 1
    %p128 = por %p126, %p127
    %p130 = scmp.ne.s32.totalorder %s113, %s129
    %p131 = scmp.eq.s32.totalorder %s16, 0
    %p132 = por %p130, %p131
    %p133 = scmp.le.s32.totalorder 1, %s10
    %p134 = scmp.lt.s32.totalorder %s10, 3
    %p135 = pnand %p133, %p134
    %p136 = pneg %p135
    // Predicated region
    $region9: #{residual_block.3} parent=5 // pred_check
      _
    $region10: #{residual_block.3} parent=5 // pred_check_branch
      %138 = sbr.rel (%p135) target = $region12
    $region11: #{residual_block.3} parent=5 // pred_region
      %s139 = ssub.s32 %s10, 1
      // Predicated region
      $region13: #{residual_block.3} parent=11 // pred_check
        %p140 = pneg %p57
      $region14: #{residual_block.3} parent=11 // pred_check_branch
        %142 = sbr.rel (%p140) target = $region16
      $region15: #{residual_block.3} parent=11 // pred_region
        _
      $region16: #{residual_block.3} parent=11 // pred_fallthru
        _
      // Predicated region
      $region17: #{residual_block.3} parent=11 // pred_check
        %p143 = pneg %p78
      $region18: #{residual_block.3} parent=11 // pred_check_branch
        %145 = sbr.rel (%p143) target = $region20
      $region19: #{residual_block.3} parent=11 // pred_region
        _
      $region20: #{residual_block.3} parent=11 // pred_fallthru
        _
      // Predicated region
      $region21: #{residual_block.3} parent=11 // pred_check
        %p146 = pneg %p99
      $region22: #{residual_block.3} parent=11 // pred_check_branch
        %148 = sbr.rel (%p146) target = $region24
      $region23: #{residual_block.3} parent=11 // pred_region
        _
      $region24: #{residual_block.3} parent=11 // pred_fallthru
        _
    $region12: #{residual_block.3} parent=5 // pred_fallthru
      _
    %p149 = scmp.lt.s32.totalorder %s10, 2
    // Predicated region
    $region25: #{residual_block.3} parent=5 // pred_check
      %p150 = pneg %p149
    $region26: #{residual_block.3} parent=5 // pred_check_branch
      %152 = sbr.rel (%p150) target = $region28
    $region27: #{residual_block.3} parent=5 // pred_region
      // Predicated region
      $region29: #{residual_block.3} parent=27 // pred_check
        %p153 = pneg %p30
      $region30: #{residual_block.3} parent=27 // pred_check_branch
        %155 = sbr.rel (%p153) target = $region32
      $region31: #{residual_block.3} parent=27 // pred_region
        %p156 = scmp.lt.s32.totalorder %s10, 1
        %s157 = scalar_select %p156, %s10, 1
        %s158 = smul.addr %s157, 4
        %s159 = smul.addr %s158, 8
        %s160 = scalar_lea.vmem %s0, %s159
      $region32: #{residual_block.3} parent=27 // pred_fallthru
        _
    $region28: #{residual_block.3} parent=5 // pred_fallthru
      _
    %p161 = scmp.le.s32.totalorder 1, %s10
    %p162 = scmp.lt.s32.totalorder %s10, 3
    %p163 = pnand %p161, %p162
    %p164 = pneg %p163
    // Predicated region
    $region33: #{residual_block.3} parent=5 // pred_check
      _
    $region34: #{residual_block.3} parent=5 // pred_check_branch
      %166 = sbr.rel (%p163) target = $region36
    $region35: #{residual_block.3} parent=5 // pred_region
      %s167 = ssub.s32 %s10, 1
      %p168 = scmp.lt.s32.totalorder %s15, 1
      %s169 = scalar_select %p168, %s15, 1
      %s170 = smul.addr %s169, 4
      %s171 = smul.addr %s170, 8
      %s172 = scalar_lea.vmem %s0, %s171
      %p173 = pneg %p36
      %p174 = pneg %p33
      %p175 = pneg %p57
      %p176 = pneg %p54
      %p177 = pneg %p78
      %p178 = pneg %p75
      %p179 = pneg %p99
      %p180 = pneg %p96
      %p181 = pneg %p125
      %p182 = pneg %p122
      %p183 = scmp.lt.s32.totalorder %s15, 1
      %s184 = scalar_select %p183, %s15, 1
      %s185 = smul.addr %s184, 4
      %s186 = smul.addr %s185, 8
      %s187 = scalar_lea.vmem %s4, %s186
      %p188 = scmp.lt.s32.totalorder %s15, 1
      %s189 = scalar_select %p188, %s15, 1
      %s190 = smul.addr %s189, 4
      %s191 = smul.addr %s190, 8
      %s192 = scalar_lea.vmem %s0, %s191
      %p193 = scmp.lt.s32.totalorder %s15, 1
      %s194 = scalar_select %p193, %s15, 1
      %s195 = smul.addr %s194, 4
      %s196 = smul.addr %s195, 8
      %s197 = scalar_lea.vmem %s4, %s196
      %v198 = vld [vmem:[%s192] sm:$0xff]
      %v199 = vld [vmem:[%s192 + $0x8] sm:$0xff]
      %v200 = vld [vmem:[%s192 + $0x10] sm:$0xff]
      %v201 = vld [vmem:[%s192 + $0x18] sm:$0xff]
      %v202 = vld [vmem:[%s3] sm:$0xff]
      %v203 = vld [vmem:[%s3 + $0x8] sm:$0xff]
      %v204 = vld [vmem:[%s3 + $0x10] sm:$0xff]
      %v205 = vld [vmem:[%s3 + $0x18] sm:$0xff]
      %v206 = vld [vmem:[%s1] sm:$0xff]
      %v207 = vld [vmem:[%s1 + $0x8] sm:$0xff]
      %v208 = vld [vmem:[%s1 + $0x10] sm:$0xff]
      %v209 = vld [vmem:[%s1 + $0x18] sm:$0xff]
      %211 = vset.pattern.permute.xlu0 0
      %212 = vperm.xlu0 %211, %v202
      %v213 = vpop.permute.xlu0 %212
      %216 = vset.pattern.permute.xlu0 0
      %217 = vperm.xlu0 %216, %v203
      %v218 = vpop.permute.xlu0 %217
      %221 = vset.pattern.permute.xlu0 0
      %222 = vperm.xlu0 %221, %v204
      %v223 = vpop.permute.xlu0 %222
      %226 = vset.pattern.permute.xlu0 0
      %227 = vperm.xlu0 %226, %v205
      %v228 = vpop.permute.xlu0 %227
      %v230 = vmul.f32 %v198, %v213
      %v231 = vmul.f32 %v199, %v218
      %v232 = vmul.f32 %v200, %v223
      %v233 = vmul.f32 %v201, %v228
      %234 = vset.pattern.permute.xlu0 1
      %235 = vperm.xlu0 %234, %v202
      %v236 = vpop.permute.xlu0 %235
      %238 = vset.pattern.permute.xlu0 1
      %239 = vperm.xlu0 %238, %v203
      %v240 = vpop.permute.xlu0 %239
      %242 = vset.pattern.permute.xlu0 1
      %243 = vperm.xlu0 %242, %v204
      %v244 = vpop.permute.xlu0 %243
      %246 = vset.pattern.permute.xlu0 1
      %247 = vperm.xlu0 %246, %v205
      %v248 = vpop.permute.xlu0 %247
      %v250 = vadd.f32 %v230, %v236
      %v251 = vadd.f32 %v231, %v240
      %v252 = vadd.f32 %v232, %v244
      %v253 = vadd.f32 %v233, %v248
      %v254 = vmax.f32 %v250, 0.0
      %v255 = vmax.f32 %v251, 0.0
      %v256 = vmax.f32 %v252, 0.0
      %v257 = vmax.f32 %v253, 0.0
      %262 = vrot.lane.b32.xlu0 %v254, 2
      %v263 = vpop.permute.xlu0 %262
      %264 = vrot.lane.b32.xlu0 %v255, 2
      %v265 = vpop.permute.xlu0 %264
      %266 = vrot.lane.b32.xlu0 %v256, 2
      %v267 = vpop.permute.xlu0 %266
      %268 = vrot.lane.b32.xlu0 %v257, 2
      %v269 = vpop.permute.xlu0 %268
      %vm274 = vcmask 15360
      %v275 = vsel %vm274, 0.0, %v263
      %v276 = vsel %vm274, 0.0, %v265
      %v277 = vsel %vm274, 0.0, %v267
      %v278 = vsel %vm274, 0.0, %v269
      %279 = vrot.lane.b32.xlu0 %v254, 126
      %v280 = vpop.permute.xlu0 %279
      %281 = vrot.lane.b32.xlu0 %v255, 126
      %v282 = vpop.permute.xlu0 %281
      %283 = vrot.lane.b32.xlu0 %v256, 126
      %v284 = vpop.permute.xlu0 %283
      %285 = vrot.lane.b32.xlu0 %v257, 126
      %v286 = vpop.permute.xlu0 %285
      %vm291 = vcmask 113664
      %v292 = vsel %vm291, %v280, 0.0
      %v293 = vsel %vm291, %v282, 0.0
      %v294 = vsel %vm291, %v284, 0.0
      %v295 = vsel %vm291, %v286, 0.0
      %296 = vset.pattern.permute.xlu0 2
      %297 = vperm.xlu0 %296, %v202
      %v298 = vpop.permute.xlu0 %297
      %300 = vset.pattern.permute.xlu0 2
      %301 = vperm.xlu0 %300, %v203
      %v302 = vpop.permute.xlu0 %301
      %304 = vset.pattern.permute.xlu0 2
      %305 = vperm.xlu0 %304, %v204
      %v306 = vpop.permute.xlu0 %305
      %308 = vset.pattern.permute.xlu0 2
      %309 = vperm.xlu0 %308, %v205
      %v310 = vpop.permute.xlu0 %309
      %vm312 = vcmask 785408
      %v314 = vsel %vm312, %v206, 0
      %v317 = vsel %vm312, %v207, 0
      %v320 = vsel %vm312, %v208, 0
      %v323 = vsel %vm312, %v209, 0
      %325 = vmatpush.msra.mxu0 0.0
      %326 = vmatpush.msra.mxu0 0.0
      %327 = vmatpush.msra.mxu0 0.0
      %328 = vmatpush.msra.mxu0 0.0
      %329 = vmatpush.msra.mxu0 %v295
      %330 = vmatpush.msra.mxu0 %v294
      %331 = vmatpush.msra.mxu0 %v293
      %332 = vmatpush.msra.mxu0 %v292
      %333 = vmatpush.msra.mxu0 %v257
      %334 = vmatpush.msra.mxu0 %v256
      %335 = vmatpush.msra.mxu0 %v255
      %336 = vmatpush.msra.mxu0 %v254
      %337 = vmatpush.msra.mxu0 %v278
      %338 = vmatpush.msra.mxu0 %v277
      %339 = vmatpush.msra.mxu0 %v276
      %340 = vmatpush.msra.mxu0 %v275
      %341 = vmatmul.f32.gmra.mxu0 %v314
      %v342 = vpop.f32.mrf.mxu0
      %v343 = vadd.f32 %v298, %v342
      %344 = vmatmul.f32.gmra.mxu0 %v317
      %v345 = vpop.f32.mrf.mxu0
      %v346 = vadd.f32 %v302, %v345
      %347 = vmatmul.f32.gmra.mxu0 %v320
      %v348 = vpop.f32.mrf.mxu0
      %v349 = vadd.f32 %v306, %v348
      %350 = vmatmul.f32.gmra.mxu0 %v323
      %v351 = vpop.f32.mrf.mxu0
      %v352 = vadd.f32 %v310, %v351
      %353 = vdwg.mxu0
      %v354 = vld [vmem:[%s2] sm:$0xff]
      %v355 = vld [vmem:[%s2 + $0x8] sm:$0xff]
      %v356 = vld [vmem:[%s2 + $0x10] sm:$0xff]
      %v357 = vld [vmem:[%s2 + $0x18] sm:$0xff]
      %358 = vset.pattern.permute.xlu0 3
      %359 = vperm.xlu0 %358, %v202
      %v360 = vpop.permute.xlu0 %359
      %362 = vset.pattern.permute.xlu0 3
      %363 = vperm.xlu0 %362, %v203
      %v364 = vpop.permute.xlu0 %363
      %366 = vset.pattern.permute.xlu0 3
      %367 = vperm.xlu0 %366, %v204
      %v368 = vpop.permute.xlu0 %367
      %370 = vset.pattern.permute.xlu0 3
      %371 = vperm.xlu0 %370, %v205
      %v372 = vpop.permute.xlu0 %371
      %v374 = vmul.f32 %v343, %v360
      %v375 = vmul.f32 %v346, %v364
      %v376 = vmul.f32 %v349, %v368
      %v377 = vmul.f32 %v352, %v372
      %378 = vset.pattern.permute.xlu0 4
      %379 = vperm.xlu0 %378, %v202
      %v380 = vpop.permute.xlu0 %379
      %382 = vset.pattern.permute.xlu0 4
      %383 = vperm.xlu0 %382, %v203
      %v384 = vpop.permute.xlu0 %383
      %386 = vset.pattern.permute.xlu0 4
      %387 = vperm.xlu0 %386, %v204
      %v388 = vpop.permute.xlu0 %387
      %390 = vset.pattern.permute.xlu0 4
      %391 = vperm.xlu0 %390, %v205
      %v392 = vpop.permute.xlu0 %391
      %v394 = vadd.f32 %v374, %v380
      %v395 = vadd.f32 %v375, %v384
      %v396 = vadd.f32 %v376, %v388
      %v397 = vadd.f32 %v377, %v392
      %v398 = vmax.f32 %v394, 0.0
      %v399 = vmax.f32 %v395, 0.0
      %v400 = vmax.f32 %v396, 0.0
      %v401 = vmax.f32 %v397, 0.0
      %406 = vrot.lane.b32.xlu0 %v398, 2
      %v407 = vpop.permute.xlu0 %406
      %408 = vrot.lane.b32.xlu0 %v399, 2
      %v409 = vpop.permute.xlu0 %408
      %410 = vrot.lane.b32.xlu0 %v400, 2
      %v411 = vpop.permute.xlu0 %410
      %412 = vrot.lane.b32.xlu0 %v401, 2
      %v413 = vpop.permute.xlu0 %412
      %v418 = vsel %vm274, 0.0, %v407
      %v419 = vsel %vm274, 0.0, %v409
      %v420 = vsel %vm274, 0.0, %v411
      %v421 = vsel %vm274, 0.0, %v413
      %422 = vrot.lane.b32.xlu0 %v398, 126
      %v423 = vpop.permute.xlu0 %422
      %424 = vrot.lane.b32.xlu0 %v399, 126
      %v425 = vpop.permute.xlu0 %424
      %426 = vrot.lane.b32.xlu0 %v400, 126
      %v427 = vpop.permute.xlu0 %426
      %428 = vrot.lane.b32.xlu0 %v401, 126
      %v429 = vpop.permute.xlu0 %428
      %v434 = vsel %vm291, %v423, 0.0
      %v435 = vsel %vm291, %v425, 0.0
      %v436 = vsel %vm291, %v427, 0.0
      %v437 = vsel %vm291, %v429, 0.0
      %438 = vset.pattern.permute.xlu0 5
      %439 = vperm.xlu0 %438, %v202
      %v440 = vpop.permute.xlu0 %439
      %442 = vset.pattern.permute.xlu0 5
      %443 = vperm.xlu0 %442, %v203
      %v444 = vpop.permute.xlu0 %443
      %446 = vset.pattern.permute.xlu0 5
      %447 = vperm.xlu0 %446, %v204
      %v448 = vpop.permute.xlu0 %447
      %450 = vset.pattern.permute.xlu0 5
      %451 = vperm.xlu0 %450, %v205
      %v452 = vpop.permute.xlu0 %451
      %v455 = vsel %vm312, %v354, 0
      %v458 = vsel %vm312, %v355, 0
      %v461 = vsel %vm312, %v356, 0
      %v464 = vsel %vm312, %v357, 0
      %466 = vmatpush.msra.mxu0 0.0
      %467 = vmatpush.msra.mxu0 0.0
      %468 = vmatpush.msra.mxu0 0.0
      %469 = vmatpush.msra.mxu0 0.0
      %470 = vmatpush.msra.mxu0 %v437
      %471 = vmatpush.msra.mxu0 %v436
      %472 = vmatpush.msra.mxu0 %v435
      %473 = vmatpush.msra.mxu0 %v434
      %474 = vmatpush.msra.mxu0 %v401
      %475 = vmatpush.msra.mxu0 %v400
      %476 = vmatpush.msra.mxu0 %v399
      %477 = vmatpush.msra.mxu0 %v398
      %478 = vmatpush.msra.mxu0 %v421
      %479 = vmatpush.msra.mxu0 %v420
      %480 = vmatpush.msra.mxu0 %v419
      %481 = vmatpush.msra.mxu0 %v418
      %482 = vmatmul.f32.gmra.mxu0 %v455
      %v483 = vpop.f32.mrf.mxu0
      %v484 = vadd.f32 %v440, %v483
      %485 = vmatmul.f32.gmra.mxu0 %v458
      %v486 = vpop.f32.mrf.mxu0
      %v487 = vadd.f32 %v444, %v486
      %488 = vmatmul.f32.gmra.mxu0 %v461
      %v489 = vpop.f32.mrf.mxu0
      %v490 = vadd.f32 %v448, %v489
      %491 = vmatmul.f32.gmra.mxu0 %v464
      %v492 = vpop.f32.mrf.mxu0
      %v493 = vadd.f32 %v452, %v492
      %494 = vdwg.mxu0
      %v495 = vadd.f32 %v484, %v198
      %v496 = vadd.f32 %v487, %v199
      %v497 = vadd.f32 %v490, %v200
      %v498 = vadd.f32 %v493, %v201
      %vm499 = vcmask 130048
      %500 = vst.msk [vmem:[%s197] sm:$0xff] %vm499, %v495
      %501 = vst.msk [vmem:[%s197 + $0x8] sm:$0xff] %vm499, %v496
      %502 = vst.msk [vmem:[%s197 + $0x10] sm:$0xff] %vm499, %v497
      %503 = vst.msk [vmem:[%s197 + $0x18] sm:$0xff] %vm499, %v498
      %p504 = scmp.lt.s32.totalorder %s15, 1
      %s505 = scalar_select %p504, %s15, 1
      %s506 = smul.addr %s505, 4
      %s507 = smul.addr %s506, 8
      %s508 = scalar_lea.vmem %s4, %s507
      // Predicated region
      $region37: #{residual_block.3} parent=35 // pred_check
        %p509 = pneg %p122
      $region38: #{residual_block.3} parent=35 // pred_check_branch
        %511 = sbr.rel (%p509) target = $region40
      $region39: #{residual_block.3} parent=35 // pred_region
        _
      $region40: #{residual_block.3} parent=35 // pred_fallthru
        _
    $region36: #{residual_block.3} parent=5 // pred_fallthru
      _
    %p512 = scmp.le.s32.totalorder 2, %s10
    // Predicated region
    $region41: #{residual_block.3} parent=5 // pred_check
      %p513 = pneg %p512
    $region42: #{residual_block.3} parent=5 // pred_check_branch
      %515 = sbr.rel (%p513) target = $region44
    $region43: #{residual_block.3} parent=5 // pred_region
      %s516 = ssub.s32 %s10, 2
      // Predicated region
      $region45: #{residual_block.3} parent=43 // pred_check
        %p517 = pneg %p128
      $region46: #{residual_block.3} parent=43 // pred_check_branch
        %519 = sbr.rel (%p517) target = $region48
      $region47: #{residual_block.3} parent=43 // pred_region
        %p520 = scmp.lt.s32.totalorder %s16, 1
        %s521 = scalar_select %p520, %s16, 1
        %s522 = smul.addr %s521, 4
        %s523 = smul.addr %s522, 8
        %s524 = scalar_lea.vmem %s4, %s523
      $region48: #{residual_block.3} parent=43 // pred_fallthru
        _
    $region44: #{residual_block.3} parent=5 // pred_fallthru
      _
  $region6: #{residual_block.3} parent=0 // loop_footer
    %s14 = sadd.s32 1, %s10
  $region7: #{residual_block.3} parent=0 // loop_footer_branch
    %9 = sbr.rel target = $region3
  $region8: #{residual_block.3} parent=0 // loop_exit
    _

</llo_original>
